<compile_context>
chip_gen: v6e
topology: v6e:2x2x1
jax: 0.10.0
libtpu: 0.0.40
codegen_flags: <defaults>
</compile_context>

<pallas_src>
import functools

import jax
import jax.numpy as jnp
from jax import lax
from jax.experimental import pallas as pl
from jax.experimental.pallas import tpu as pltpu


def fullmodel_kernel(hid_ref, dec_ref, w1h_ref, w1d_ref, b1_ref, w2_ref, b2_ref,
                     outpute_ref, sig_ref):
    """Fused: hid@W1h + dec@W1d + b1 -> ReLU -> (decoder stub) -> w2 row proj -> sigmoid."""
    # Two K-split MXU pushes accumulated in f32 (replaces the wrapper concat;
    # K=Hh and K=Hd are both padded to the MXU's native contraction width anyway).
    h = jnp.dot(hid_ref[...], w1h_ref[...], preferred_element_type=jnp.float32)
    h = h + jnp.dot(dec_ref[...], w1d_ref[...], preferred_element_type=jnp.float32)
    h = jnp.maximum(h + b1_ref[...], 0.0)                 # liner1 + ReLU
    # TODO(synk): self.decoder is an injected opaque submodule; modeled as
    # identity (outpute = relu(liner1(...))), attention `aa` returned as None.
    outpute_ref[...] = h                                  # lane-dense (O padded to 128*k)
    # liner2 (out_features=1) as a (1,Opad) x (TB,Opad) contraction over Opad:
    # produces a lane-dense (1, TB) row instead of a 1-lane-wide column.
    y = lax.dot_general(w2_ref[...], h, (((1,), (1,)), ((), ())),
                        preferred_element_type=jnp.float32)
    sig_ref[0] = jax.nn.sigmoid(y + b2_ref[0, 0])         # torch.sigmoid(liner2(...))


def prepare_params(w1, b1, w2, b2, enc_width):
    """One-time parameter plumbing (hoisted out of the per-call path).

    w1: [O, H] PyTorch Linear weight with H = enc_width + dec_width.
    b1: [O], w2: [1, O], b2: [1].

    Splits W1 along K (so the kernel never needs the concatenated input) and
    zero-pads the output feature dim to a multiple of 128 lanes so every
    outpute vreg / HBM store is lane-dense (exact: ReLU(0)=0, padded w2 = 0).
    """
    O, _H = w1.shape
    O_pad = ((O + 127) // 128) * 128
    pad = O_pad - O
    w1t = jnp.transpose(w1)                           # [H, O]
    if pad:
        w1t = jnp.pad(w1t, ((0, 0), (0, pad)))        # [H, O_pad]
        b1 = jnp.pad(b1, (0, pad))
        w2 = jnp.pad(w2, ((0, 0), (0, pad)))
    w1h_t = w1t[:enc_width]                           # [Hh, O_pad]
    w1d_t = w1t[enc_width:]                           # [Hd, O_pad]
    b1r = b1.reshape(1, -1)                           # [1, O_pad]
    w2r = w2.reshape(1, -1)                           # [1, O_pad]
    b2r = b2.reshape(1, 1)                            # [1, 1]  (SMEM scalar)
    return w1h_t, w1d_t, b1r, w2r, b2r


def _pick_tb(batch):
    """Batch tile: single tile for small B; for large B keep >=2 parallel grid
    steps (v7x has 2 TensorCores) while staying at 256/512-row tiles that sit
    near the measured HBM roofline on v5e/v6e."""
    if batch < 512:
        return batch
    if batch < 1024:
        return 256
    return 512


@functools.partial(jax.jit, static_argnames=("num_layer", "output_size"))
def fullmodel_forward(hidden, dec_output, params, num_layer, output_size):
    """hidden: [L, B, Hh] (encoder hidden states), dec_output: [B, Hd]."""
    w1h_t, w1d_t, b1r, w2r, b2r = params
    layer = num_layer - 1                             # self.num_layer = num_layer - 1
    _L, B, Hh = hidden.shape
    Hd = dec_output.shape[1]
    O_pad = w1h_t.shape[1]

    TB = _pick_tb(B)
    G = pl.cdiv(B, TB)

    outpute_pad, sig_rows = pl.pallas_call(
        fullmodel_kernel,
        out_shape=(
            jax.ShapeDtypeStruct((B, O_pad), jnp.float32),
            jax.ShapeDtypeStruct((G, 1, TB), jnp.float32),
        ),
        grid=(G,),
        in_specs=[
            # hidden[num_layer-1] selected by the index_map (layer dim squeezed);
            # no wrapper-side slice / extra HBM copy of hid.
            pl.BlockSpec((None, TB, Hh), lambda i: (layer, i, 0)),
            pl.BlockSpec((TB, Hd), lambda i: (i, 0)),          # decode output
            pl.BlockSpec((Hh, O_pad), lambda i: (0, 0)),       # W1h.T (resident)
            pl.BlockSpec((Hd, O_pad), lambda i: (0, 0)),       # W1d.T (resident)
            pl.BlockSpec((1, O_pad), lambda i: (0, 0)),        # b1
            pl.BlockSpec((1, O_pad), lambda i: (0, 0)),        # w2 row
            pl.BlockSpec(memory_space=pltpu.MemorySpace.SMEM),  # b2 scalar in SMEM
        ],
        out_specs=(
            pl.BlockSpec((TB, O_pad), lambda i: (i, 0)),       # outpute (lane-dense)
            pl.BlockSpec((1, 1, TB), lambda i: (i, 0, 0)),     # sigmoid row per tile
        ),
        compiler_params=pltpu.CompilerParams(
            dimension_semantics=("parallel",),                 # megacore-shardable
            vmem_limit_bytes=32 << 20,                         # explicit budget (v7x-safe)
        ),
    )(hidden, dec_output, w1h_t, w1d_t, b1r, w2r, b2r)

    # Slice the lane padding back off (no-op when O is already a multiple of 128).
    outpute = outpute_pad[:, :output_size] if O_pad != output_size else outpute_pad
    outputs11 = sig_rows.reshape(G * TB, 1)[:B]

    aa = None  # decoder attention placeholder (decoder is an external stub)
    return outpute, outputs11, aa


if __name__ == "__main__":
    key = jax.random.PRNGKey(0)

    # Small shapes implied by the forward:
    B = 8                     # batch
    enc_hidden = 16           # width of encoder hidden state hid
    dec_out = 16              # width of self.decode output
    hidden_size = enc_hidden + dec_out   # liner1 in_features (cat dim)
    output_size = 64          # liner1 out_features
    num_layer = 2             # module indexes hidden[num_layer - 1]

    keys = jax.random.split(key, 6)

    # TODO(synk): self.encoder / self.decode are injected opaque submodules
    # (TreeLSTM-style encoder and a sequence decoder); their outputs are
    # synthesized deterministically here instead of re-implementing them.
    hidden = jax.random.normal(keys[0], (num_layer, B, enc_hidden), jnp.float32)
    dec_output = jax.random.normal(keys[1], (B, dec_out), jnp.float32)

    # Deterministic nn.Linear-style init (uniform in +-1/sqrt(fan_in)).
    lim1 = 1.0 / (hidden_size ** 0.5)
    w1 = jax.random.uniform(keys[2], (output_size, hidden_size), jnp.float32, -lim1, lim1)
    b1 = jax.random.uniform(keys[3], (output_size,), jnp.float32, -lim1, lim1)
    lim2 = 1.0 / (output_size ** 0.5)
    w2 = jax.random.uniform(keys[4], (1, output_size), jnp.float32, -lim2, lim2)
    b2 = jax.random.uniform(keys[5], (1,), jnp.float32, -lim2, lim2)

    # Hoisted parameter preprocessing: done ONCE, not per forward call.
    params = prepare_params(w1, b1, w2, b2, enc_hidden)
    params = jax.block_until_ready(params)

    outpute, outputs11, aa = fullmodel_forward(hidden, dec_output, params,
                                               num_layer, output_size)
    jax.block_until_ready((outpute, outputs11))

    # Pure-JAX reference of the same math (concat -> linear -> relu -> linear -> sigmoid).
    hid = hidden[num_layer - 1]
    x = jnp.concatenate([hid, dec_output], axis=1)
    h_ref = jnp.maximum(x @ w1.T + b1, 0.0)
    y_ref = jax.nn.sigmoid(h_ref @ w2.T + b2)
    assert outpute.shape == (B, output_size) and outputs11.shape == (B, 1)
    assert jnp.allclose(outpute, h_ref, atol=1e-5), "outpute mismatch"
    assert jnp.allclose(outputs11, y_ref, atol=1e-5), "sigmoid output mismatch"

    print("KERNEL_OK")
</pallas_src>

<mosaic_0001>
module attributes {stable_mosaic.version = 11 : i64} {
  func.func @fullmodel_kernel(%arg0: i32, %arg1: memref<1x8x16xf32, #tpu.memory_space<vmem>>, %arg2: memref<8x16xf32, #tpu.memory_space<vmem>>, %arg3: memref<16x128xf32, #tpu.memory_space<vmem>>, %arg4: memref<16x128xf32, #tpu.memory_space<vmem>>, %arg5: memref<1x128xf32, #tpu.memory_space<vmem>>, %arg6: memref<1x128xf32, #tpu.memory_space<vmem>>, %arg7: memref<1x1xf32, #tpu.memory_space<smem>>, %arg8: memref<8x128xf32, #tpu.memory_space<vmem>>, %arg9: memref<1x1x8xf32, #tpu.memory_space<vmem>>) attributes {dimension_semantics = [#tpu.dimension_semantics<parallel>], iteration_bounds = array<i64: 1>, scalar_prefetch = 0 : i64, scratch_operands = 0 : i64, tpu.core_type = #tpu.core_type<tc>, window_params = [{transform_indices = @transform_0, window_bounds = array<i64: 1, 8, 16>}, {transform_indices = @transform_1, window_bounds = array<i64: 8, 16>}, {pipeline_mode = #tpu.pipeline_mode<synchronous>, transform_indices = @transform_2, window_bounds = array<i64: 16, 128>}, {pipeline_mode = #tpu.pipeline_mode<synchronous>, transform_indices = @transform_3, window_bounds = array<i64: 16, 128>}, {pipeline_mode = #tpu.pipeline_mode<synchronous>, transform_indices = @transform_4, window_bounds = array<i64: 1, 128>}, {pipeline_mode = #tpu.pipeline_mode<synchronous>, transform_indices = @transform_5, window_bounds = array<i64: 1, 128>}, {transform_indices = @transform_6, window_bounds = array<i64: 1, 1>}, {transform_indices = @transform_7, window_bounds = array<i64: 8, 128>}, {transform_indices = @transform_8, window_bounds = array<i64: 1, 1, 8>}]} {
    %c0 = arith.constant 0 : index
    %c0_0 = arith.constant 0 : index
    %c0_1 = arith.constant 0 : index
    %0 = vector.load %arg1[%c0, %c0_0, %c0_1] : memref<1x8x16xf32, #tpu.memory_space<vmem>>, vector<1x8x16xf32>
    %1 = vector.shape_cast %0 : vector<1x8x16xf32> to vector<8x16xf32>
    %c0_2 = arith.constant 0 : index
    %c0_3 = arith.constant 0 : index
    %2 = vector.load %arg3[%c0_2, %c0_3] : memref<16x128xf32, #tpu.memory_space<vmem>>, vector<16x128xf32>
    %cst = arith.constant dense<0.000000e+00> : vector<8x128xf32>
    %3 = tpu.matmul %1, %2, %cst {dimension_numbers = #tpu.dot_dimension_numbers<[1], [0], [0], [1], [0, 0, 1, 1], [], []>} : vector<8x16xf32>, vector<16x128xf32>, vector<8x128xf32> -> vector<8x128xf32>
    %c0_4 = arith.constant 0 : index
    %c0_5 = arith.constant 0 : index
    %4 = vector.load %arg2[%c0_4, %c0_5] : memref<8x16xf32, #tpu.memory_space<vmem>>, vector<8x16xf32>
    %c0_6 = arith.constant 0 : index
    %c0_7 = arith.constant 0 : index
    %5 = vector.load %arg4[%c0_6, %c0_7] : memref<16x128xf32, #tpu.memory_space<vmem>>, vector<16x128xf32>
    %cst_8 = arith.constant dense<0.000000e+00> : vector<8x128xf32>
    %6 = tpu.matmul %4, %5, %cst_8 {dimension_numbers = #tpu.dot_dimension_numbers<[1], [0], [0], [1], [0, 0, 1, 1], [], []>} : vector<8x16xf32>, vector<16x128xf32>, vector<8x128xf32> -> vector<8x128xf32>
    %7 = arith.addf %3, %6 : vector<8x128xf32>
    %c0_9 = arith.constant 0 : index
    %c0_10 = arith.constant 0 : index
    %8 = vector.load %arg5[%c0_9, %c0_10] : memref<1x128xf32, #tpu.memory_space<vmem>>, vector<1x128xf32>
    %9 = vector.broadcast %8 : vector<1x128xf32> to vector<8x128xf32>
    %10 = arith.addf %7, %9 : vector<8x128xf32>
    %cst_11 = arith.constant 0.000000e+00 : f32
    %11 = vector.broadcast %cst_11 : f32 to vector<8x128xf32>
    %12 = arith.maximumf %10, %11 : vector<8x128xf32>
    %c0_12 = arith.constant 0 : index
    %c0_13 = arith.constant 0 : index
    %13 = vector.load %arg8[%c0_12, %c0_13] : memref<8x128xf32, #tpu.memory_space<vmem>>, vector<8x128xf32>
    tpu.vector_store %arg8[%c0_12, %c0_13], %12 {strides = array<i32>} : memref<8x128xf32, #tpu.memory_space<vmem>>, vector<8x128xf32>,
    %c0_14 = arith.constant 0 : index
    %c0_15 = arith.constant 0 : index
    %14 = vector.load %arg6[%c0_14, %c0_15] : memref<1x128xf32, #tpu.memory_space<vmem>>, vector<1x128xf32>
    %cst_16 = arith.constant dense<0.000000e+00> : vector<1x8xf32>
    %15 = tpu.matmul %14, %12, %cst_16 {dimension_numbers = #tpu.dot_dimension_numbers<[1], [1], [0], [0], [0, 0, 1, 0], [], []>} : vector<1x128xf32>, vector<8x128xf32>, vector<1x8xf32> -> vector<1x8xf32>
    %c0_17 = arith.constant 0 : index
    %c0_18 = arith.constant 0 : index
    %16 = memref.load %arg7[%c0_17, %c0_18] : memref<1x1xf32, #tpu.memory_space<smem>>
    %17 = vector.broadcast %16 : f32 to vector<1x8xf32>
    %18 = arith.addf %15, %17 : vector<1x8xf32>
    %19 = arith.negf %18 : vector<1x8xf32>
    %20 = math.exp %19 : vector<1x8xf32>
    %cst_19 = arith.constant 1.000000e+00 : f32
    %21 = vector.broadcast %cst_19 : f32 to vector<1x8xf32>
    %22 = arith.addf %21, %20 : vector<1x8xf32>
    %23 = arith.divf %21, %22 : vector<1x8xf32>
    %c0_20 = arith.constant 0 : index
    %c0_21 = arith.constant 0 : index
    %c0_22 = arith.constant 0 : index
    %24 = vector.load %arg9[%c0_20, %c0_21, %c0_22] : memref<1x1x8xf32, #tpu.memory_space<vmem>>, vector<1x1x8xf32>
    %25 = vector.shape_cast %24 : vector<1x1x8xf32> to vector<1x8xf32>
    %26 = vector.shape_cast %23 : vector<1x8xf32> to vector<1x1x8xf32>
    tpu.vector_store %arg9[%c0_20, %c0_21, %c0_22], %26 {strides = array<i32>} : memref<1x1x8xf32, #tpu.memory_space<vmem>>, vector<1x1x8xf32>,
    return
  }
  func.func @transform_0(%arg0: i32) -> (i32, i32, i32) {
    %c1_i32 = arith.constant 1 : i32
    %c0_i32 = arith.constant 0 : i32
    %c0_i32_0 = arith.constant 0 : i32
    return %c1_i32, %arg0, %c0_i32 : i32, i32, i32
  }
  func.func @transform_1(%arg0: i32) -> (i32, i32) {
    %c0_i32 = arith.constant 0 : i32
    %c0_i32_0 = arith.constant 0 : i32
    return %arg0, %c0_i32 : i32, i32
  }
  func.func @transform_2(%arg0: i32) -> (i32, i32) {
    %c0_i32 = arith.constant 0 : i32
    %c0_i32_0 = arith.constant 0 : i32
    %c0_i32_1 = arith.constant 0 : i32
    return %c0_i32, %c0_i32_0 : i32, i32
  }
  func.func @transform_3(%arg0: i32) -> (i32, i32) {
    %c0_i32 = arith.constant 0 : i32
    %c0_i32_0 = arith.constant 0 : i32
    %c0_i32_1 = arith.constant 0 : i32
    return %c0_i32, %c0_i32_0 : i32, i32
  }
  func.func @transform_4(%arg0: i32) -> (i32, i32) {
    %c0_i32 = arith.constant 0 : i32
    %c0_i32_0 = arith.constant 0 : i32
    %c0_i32_1 = arith.constant 0 : i32
    return %c0_i32, %c0_i32_0 : i32, i32
  }
  func.func @transform_5(%arg0: i32) -> (i32, i32) {
    %c0_i32 = arith.constant 0 : i32
    %c0_i32_0 = arith.constant 0 : i32
    %c0_i32_1 = arith.constant 0 : i32
    return %c0_i32, %c0_i32_0 : i32, i32
  }
  func.func @transform_6(%arg0: i32) -> (i32, i32) {
    %c0_i32 = arith.constant 0 : i32
    %c0_i32_0 = arith.constant 0 : i32
    %c0_i32_1 = arith.constant 0 : i32
    return %c0_i32, %c0_i32_0 : i32, i32
  }
  func.func @transform_7(%arg0: i32) -> (i32, i32) {
    %c0_i32 = arith.constant 0 : i32
    %c0_i32_0 = arith.constant 0 : i32
    return %arg0, %c0_i32 : i32, i32
  }
  func.func @transform_8(%arg0: i32) -> (i32, i32, i32) {
    %c0_i32 = arith.constant 0 : i32
    %c0_i32_0 = arith.constant 0 : i32
    %c0_i32_1 = arith.constant 0 : i32
    return %arg0, %c0_i32, %c0_i32_0 : i32, i32, i32
  }
}

</mosaic_0001>

<llo_original>
// kernel: fullmodel_forward.1
$region0: #{fullmodel_forward.1}
  #allocation0 [shape = 'u32[]', space=smem, size = 0x4, offset = 0x4, fixed_abs, tag = 'smem constant byte address 0x4 - core index']
  #allocation1 [shape = 'u32[144,128]{1,0:T(1,128)}', space=vmem, size = 0x12000, scoped, tag = 'internal scratch']
  #allocation2 [shape = 'f32[1,1]{1,0:T(1,128)S(6)}', space=smem, size = 0x200, scoped, tag = 'scoped memory for fullmodel_forward.1']
  %s0 = inlined_call_operand.hbm [shape: f32[2,8,16], index: 0, kind: input, shape index: {}]
  %s1 = inlined_call_operand.hbm [shape: f32[8,16], index: 1, kind: input, shape index: {}]
  %s2 = inlined_call_operand.hbm [shape: f32[16,128], index: 2, kind: input, shape index: {}]
  %s3 = inlined_call_operand.hbm [shape: f32[16,128], index: 3, kind: input, shape index: {}]
  %s4 = inlined_call_operand.vmem [shape: f32[1,128], index: 4, kind: input, shape index: {}]
  %s5 = inlined_call_operand.vmem [shape: f32[1,128], index: 5, kind: input, shape index: {}]
  %s6 = inlined_call_operand.<no memory space> [shape: f32[1,1], index: 6, kind: input, shape index: {}]
  %s7 = inlined_call_operand.hbm [shape: f32[8,128], index: 7, kind: output, shape index: {0}]
  %s8 = inlined_call_operand.hbm [shape: f32[1,1,8], index: 8, kind: output, shape index: {1}]
  %9 = xla_tuple %s7, %s8
  %s10 = sld [smem:[#allocation0]]
  $region62: #{fullmodel_forward.1} parent=0
    _
  %s12 = ssub.s32 1, %s10
  %s13 = scalar_select 0, %s12, %s10
  %14 = sst [smem:[#allocation2]] %s6
  $region1: #{fullmodel_forward.1} parent=0
    #allocation3 [shape = 'u8[4096]{0}', space=vmem, size = 0x1000, scoped, tag = 'input window, operand 0, single buffered']
    #allocation4 [shape = 's32[1]{0}', space=sflag, size = 0x4, scoped, tag = 'scoped memory for fullmodel_forward.1']
    #allocation5 [shape = 's32[1]{0}', space=sflag, size = 0x4, scoped, tag = 'scoped memory for fullmodel_forward.1']
    #allocation6 [shape = 'u8[4096]{0}', space=vmem, size = 0x1000, scoped, tag = 'input window, operand 1, single buffered']
    #allocation7 [shape = 's32[1]{0}', space=sflag, size = 0x4, scoped, tag = 'scoped memory for fullmodel_forward.1']
    #allocation8 [shape = 'u8[8192]{0}', space=vmem, size = 0x2000, scoped, tag = 'input window, operand 2, single buffered']
    #allocation9 [shape = 'u8[8192]{0}', space=vmem, size = 0x2000, scoped, tag = 'input window, operand 3, single buffered']
    #allocation10 [shape = 's32[1]{0}', space=sflag, size = 0x4, scoped, tag = 'scoped memory for fullmodel_forward.1']
    #allocation11 [shape = 'u8[4096]{0}', space=vmem, size = 0x1000, scoped, tag = 'output window, operand 0, single buffered']
    #allocation12 [shape = 'u8[512]{0}', space=vmem, size = 0x400, scoped, tag = 'output window, operand 1, single buffered']
    #allocation13 [shape = 's32[1]{0}', space=sflag, size = 0x4, scoped, tag = 'scoped memory for fullmodel_forward.1']
    %15 = vsyncpa [#allocation4], 0
    %16 = vsyncpa [#allocation7], 0
    %17 = vsyncpa [#allocation10], 0
    %18 = vsyncpa [#allocation5], 0
    %19 = vsyncpa [#allocation13], 0
    // Predicated region
    $region2: #{fullmodel_forward.1} parent=1 // pred_check
      _
    $region3: #{fullmodel_forward.1} parent=1 // pred_check_branch
      %21 = sbr.rel (0) target = $region5
    $region4: #{fullmodel_forward.1} parent=1 // pred_region
      %s23 = ssub.s32 128, 128
      %24 = vsyncadd [#allocation4], %s23
      %s25 = scalar_lea.hbm %s0, 128
      %s27 = sshll.u32 [#allocation3], 4
      %s28 = int_to_ptr.vmem [resolvable:$true] %s27
      %30 = dma.hbm_to_vmem [thread:$0]  %s25, 128, %s28, [#allocation4]
    $region5: #{fullmodel_forward.1} parent=1 // pred_fallthru
      _
    // Predicated region
    $region6: #{fullmodel_forward.1} parent=1 // pred_check
      _
    $region7: #{fullmodel_forward.1} parent=1 // pred_check_branch
      %32 = sbr.rel (0) target = $region9
    $region8: #{fullmodel_forward.1} parent=1 // pred_region
      %s34 = ssub.s32 128, 128
      %35 = vsyncadd [#allocation7], %s34
      %s37 = sshll.u32 [#allocation6], 4
      %s38 = int_to_ptr.vmem [resolvable:$true] %s37
      %40 = dma.hbm_to_vmem [thread:$0]  %s1, 128, %s38, [#allocation7]
    $region9: #{fullmodel_forward.1} parent=1 // pred_fallthru
      _
    // Predicated region
    $region10: #{fullmodel_forward.1} parent=1 // pred_check
      _
    $region11: #{fullmodel_forward.1} parent=1 // pred_check_branch
      %42 = sbr.rel (0) target = $region13
    $region12: #{fullmodel_forward.1} parent=1 // pred_region
      %s44 = ssub.s32 256, 256
      %45 = vsyncadd [#allocation7], %s44
      %s46 = sshll.u32 [#allocation8], 4
      %s47 = int_to_ptr.vmem [resolvable:$true] %s46
      %52 = dma.hbm_to_vmem [thread:$0]  %s2, 256, %s47, [#allocation7], 128, 128, 8
    $region13: #{fullmodel_forward.1} parent=1 // pred_fallthru
      _
    // Predicated region
    $region14: #{fullmodel_forward.1} parent=1 // pred_check
      _
    $region15: #{fullmodel_forward.1} parent=1 // pred_check_branch
      %54 = sbr.rel (0) target = $region17
    $region16: #{fullmodel_forward.1} parent=1 // pred_region
      %s56 = ssub.s32 256, 256
      %57 = vsyncadd [#allocation10], %s56
      %s58 = sshll.u32 [#allocation9], 4
      %s59 = int_to_ptr.vmem [resolvable:$true] %s58
      %64 = dma.hbm_to_vmem [thread:$0]  %s3, 256, %s59, [#allocation10], 128, 128, 8
    $region17: #{fullmodel_forward.1} parent=1 // pred_fallthru
      _
    // Predicated region
    $region18: #{fullmodel_forward.1} parent=1 // pred_check
      _
    $region19: #{fullmodel_forward.1} parent=1 // pred_check_branch
      %66 = sbr.rel (0) target = $region21
    $region20: #{fullmodel_forward.1} parent=1 // pred_region
      _
    $region21: #{fullmodel_forward.1} parent=1 // pred_fallthru
      _
    // Predicated region
    $region22: #{fullmodel_forward.1} parent=1 // pred_check
      _
    $region23: #{fullmodel_forward.1} parent=1 // pred_check_branch
      %68 = sbr.rel (0) target = $region25
    $region24: #{fullmodel_forward.1} parent=1 // pred_region
      _
    $region25: #{fullmodel_forward.1} parent=1 // pred_fallthru
      _
    // Predicated region
    $region26: #{fullmodel_forward.1} parent=1 // pred_check
      _
    $region27: #{fullmodel_forward.1} parent=1 // pred_check_branch
      %70 = sbr.rel (0) target = $region29
    $region28: #{fullmodel_forward.1} parent=1 // pred_region
      _
    $region29: #{fullmodel_forward.1} parent=1 // pred_fallthru
      _
    // Predicated region
    $region30: #{fullmodel_forward.1} parent=1 // pred_check
      _
    $region31: #{fullmodel_forward.1} parent=1 // pred_check_branch
      %72 = sbr.rel (0) target = $region33
    $region32: #{fullmodel_forward.1} parent=1 // pred_region
      %73 = dma.done [#allocation4], 128
    $region33: #{fullmodel_forward.1} parent=1 // pred_fallthru
      _
    // Predicated region
    $region34: #{fullmodel_forward.1} parent=1 // pred_check
      _
    $region35: #{fullmodel_forward.1} parent=1 // pred_check_branch
      %75 = sbr.rel (0) target = $region37
    $region36: #{fullmodel_forward.1} parent=1 // pred_region
      %76 = dma.done [#allocation7], 128
    $region37: #{fullmodel_forward.1} parent=1 // pred_fallthru
      _
    // Predicated region
    $region38: #{fullmodel_forward.1} parent=1 // pred_check
      _
    $region39: #{fullmodel_forward.1} parent=1 // pred_check_branch
      %78 = sbr.rel (0) target = $region41
    $region40: #{fullmodel_forward.1} parent=1 // pred_region
      %79 = dma.done [#allocation7], 256
    $region41: #{fullmodel_forward.1} parent=1 // pred_fallthru
      _
    // Predicated region
    $region42: #{fullmodel_forward.1} parent=1 // pred_check
      _
    $region43: #{fullmodel_forward.1} parent=1 // pred_check_branch
      %81 = sbr.rel (0) target = $region45
    $region44: #{fullmodel_forward.1} parent=1 // pred_region
      %82 = dma.done [#allocation10], 256
    $region45: #{fullmodel_forward.1} parent=1 // pred_fallthru
      _
    %v83 = vld [vmem:[#allocation3] sm:$0xff]
    %v84 = vld [vmem:[#allocation8] sm:$0xff]
    %v85 = vld [vmem:[#allocation8 + $0x8] sm:$0xff]
    %v86 = vld [vmem:[#allocation6] sm:$0xff]
    %v87 = vld [vmem:[#allocation9] sm:$0xff]
    %v88 = vld [vmem:[#allocation9 + $0x8] sm:$0xff]
    %vm89 = vcmask 130048
    %v91 = vsel %vm89, %v86, 0
    %93 = vmatprep.subr.mxu0 0.0
    %94 = vmatpush1.msra.mxu0 0.0
    %95 = vmatprep.subr.mxu0 0.0
    %96 = vmatpush1.msra.mxu0 0.0
    %97 = vmatprep.subr.mxu0 0.0
    %98 = vmatpush1.msra.mxu0 0.0
    %99 = vmatprep.subr.mxu0 0.0
    %100 = vmatpush1.msra.mxu0 0.0
    %101 = vmatprep.subr.mxu0 0.0
    %102 = vmatpush1.msra.mxu0 0.0
    %103 = vmatprep.subr.mxu0 0.0
    %104 = vmatpush1.msra.mxu0 0.0
    %105 = vmatprep.subr.mxu0 0.0
    %106 = vmatpush1.msra.mxu0 0.0
    %107 = vmatprep.subr.mxu0 0.0
    %108 = vmatpush1.msra.mxu0 0.0
    %109 = vmatprep.subr.mxu0 0.0
    %110 = vmatpush1.msra.mxu0 0.0
    %111 = vmatprep.subr.mxu0 0.0
    %112 = vmatpush1.msra.mxu0 0.0
    %113 = vmatprep.subr.mxu0 0.0
    %114 = vmatpush1.msra.mxu0 0.0
    %115 = vmatprep.subr.mxu0 0.0
    %116 = vmatpush1.msra.mxu0 0.0
    %117 = vmatprep.subr.mxu0 0.0
    %118 = vmatpush1.msra.mxu0 0.0
    %119 = vmatprep.subr.mxu0 0.0
    %120 = vmatpush1.msra.mxu0 0.0
    %121 = vmatprep.subr.mxu0 0.0
    %122 = vmatpush1.msra.mxu0 %v88
    %123 = vmatprep.subr.mxu0 0.0
    %124 = vmatpush1.msra.mxu0 %v87
    %125 = vmatprep.subr.mxu0 0.0
    %126 = vmatpush2.msra.mxu0 0.0
    %127 = vmatprep.subr.mxu0 0.0
    %128 = vmatpush2.msra.mxu0 0.0
    %129 = vmatprep.subr.mxu0 0.0
    %130 = vmatpush2.msra.mxu0 0.0
    %131 = vmatprep.subr.mxu0 0.0
    %132 = vmatpush2.msra.mxu0 0.0
    %133 = vmatprep.subr.mxu0 0.0
    %134 = vmatpush2.msra.mxu0 0.0
    %135 = vmatprep.subr.mxu0 0.0
    %136 = vmatpush2.msra.mxu0 0.0
    %137 = vmatprep.subr.mxu0 0.0
    %138 = vmatpush2.msra.mxu0 0.0
    %139 = vmatprep.subr.mxu0 0.0
    %140 = vmatpush2.msra.mxu0 0.0
    %141 = vmatprep.subr.mxu0 0.0
    %142 = vmatpush2.msra.mxu0 0.0
    %143 = vmatprep.subr.mxu0 0.0
    %144 = vmatpush2.msra.mxu0 0.0
    %145 = vmatprep.subr.mxu0 0.0
    %146 = vmatpush2.msra.mxu0 0.0
    %147 = vmatprep.subr.mxu0 0.0
    %148 = vmatpush2.msra.mxu0 0.0
    %149 = vmatprep.subr.mxu0 0.0
    %150 = vmatpush2.msra.mxu0 0.0
    %151 = vmatprep.subr.mxu0 0.0
    %152 = vmatpush2.msra.mxu0 0.0
    %153 = vmatprep.subr.mxu0 0.0
    %154 = vmatpush2.msra.mxu0 0.0
    %155 = vmatprep.subr.mxu0 0.0
    %156 = vmatpush2.msra.mxu0 0.0
    %157 = vmatprep.mubr.f32.mxu0 0.0
    %158 = vmatmul.mubr.f32.gmra.mxu0 %v91
    %v159 = vpop.f32.mrf.mxu0
    %v160 = vadd.f32 0.0, %v159
    %v161 = vpop.f32.mrf.mxu0
    %162 = vdwg.mxu0
    %v164 = vsel %vm89, %v83, 0
    %166 = vmatprep.subr.mxu0 0.0
    %167 = vmatpush1.msra.mxu0 0.0
    %168 = vmatprep.subr.mxu0 0.0
    %169 = vmatpush1.msra.mxu0 0.0
    %170 = vmatprep.subr.mxu0 0.0
    %171 = vmatpush1.msra.mxu0 0.0
    %172 = vmatprep.subr.mxu0 0.0
    %173 = vmatpush1.msra.mxu0 0.0
    %174 = vmatprep.subr.mxu0 0.0
    %175 = vmatpush1.msra.mxu0 0.0
    %176 = vmatprep.subr.mxu0 0.0
    %177 = vmatpush1.msra.mxu0 0.0
    %178 = vmatprep.subr.mxu0 0.0
    %179 = vmatpush1.msra.mxu0 0.0
    %180 = vmatprep.subr.mxu0 0.0
    %181 = vmatpush1.msra.mxu0 0.0
    %182 = vmatprep.subr.mxu0 0.0
    %183 = vmatpush1.msra.mxu0 0.0
    %184 = vmatprep.subr.mxu0 0.0
    %185 = vmatpush1.msra.mxu0 0.0
    %186 = vmatprep.subr.mxu0 0.0
    %187 = vmatpush1.msra.mxu0 0.0
    %188 = vmatprep.subr.mxu0 0.0
    %189 = vmatpush1.msra.mxu0 0.0
    %190 = vmatprep.subr.mxu0 0.0
    %191 = vmatpush1.msra.mxu0 0.0
    %192 = vmatprep.subr.mxu0 0.0
    %193 = vmatpush1.msra.mxu0 0.0
    %194 = vmatprep.subr.mxu0 0.0
    %195 = vmatpush1.msra.mxu0 %v85
    %196 = vmatprep.subr.mxu0 0.0
    %197 = vmatpush1.msra.mxu0 %v84
    %198 = vmatprep.subr.mxu0 0.0
    %199 = vmatpush2.msra.mxu0 0.0
    %200 = vmatprep.subr.mxu0 0.0
    %201 = vmatpush2.msra.mxu0 0.0
    %202 = vmatprep.subr.mxu0 0.0
    %203 = vmatpush2.msra.mxu0 0.0
    %204 = vmatprep.subr.mxu0 0.0
    %205 = vmatpush2.msra.mxu0 0.0
    %206 = vmatprep.subr.mxu0 0.0
    %207 = vmatpush2.msra.mxu0 0.0
    %208 = vmatprep.subr.mxu0 0.0
    %209 = vmatpush2.msra.mxu0 0.0
    %210 = vmatprep.subr.mxu0 0.0
    %211 = vmatpush2.msra.mxu0 0.0
    %212 = vmatprep.subr.mxu0 0.0
    %213 = vmatpush2.msra.mxu0 0.0
    %214 = vmatprep.subr.mxu0 0.0
    %215 = vmatpush2.msra.mxu0 0.0
    %216 = vmatprep.subr.mxu0 0.0
    %217 = vmatpush2.msra.mxu0 0.0
    %218 = vmatprep.subr.mxu0 0.0
    %219 = vmatpush2.msra.mxu0 0.0
    %220 = vmatprep.subr.mxu0 0.0
    %221 = vmatpush2.msra.mxu0 0.0
    %222 = vmatprep.subr.mxu0 0.0
    %223 = vmatpush2.msra.mxu0 0.0
    %224 = vmatprep.subr.mxu0 0.0
    %225 = vmatpush2.msra.mxu0 0.0
    %226 = vmatprep.subr.mxu0 0.0
    %227 = vmatpush2.msra.mxu0 0.0
    %228 = vmatprep.subr.mxu0 0.0
    %229 = vmatpush2.msra.mxu0 0.0
    %230 = vmatprep.mubr.f32.mxu0 0.0
    %231 = vmatmul.mubr.f32.gmra.mxu0 %v164
    %v232 = vpop.f32.mrf.mxu0
    %v233 = vadd.f32 %v160, %v232
    %v234 = vpop.f32.mrf.mxu0
    %235 = vdwg.mxu0
    %v236 = vld [vmem:[%s4] sm:$0x1]
    %v238 = vlaneseq
    %v239 = vshrl.u32 %v238, 7
    %v240 = vsub.s32 0, %v239
    %v241 = vrot.slane %v236, %v240
    %v243 = vadd.f32 %v233, %v241
    %v244 = vmax.f32 %v243, 0.0
    %245 = vst [vmem:[#allocation11] sm:$0xff] %v244
    %v246 = vld [vmem:[%s5] sm:$0x1]
    %s247 = sld [smem:[#allocation2]]
    %v248 = vstv %s247
    %249 = vmatprep.subr.mxu0 0.0
    %250 = vmatpush1.xpose.msra.mxu0 0.0
    %251 = vmatprep.subr.mxu0 0.0
    %252 = vmatpush1.xpose.msra.mxu0 0.0
    %253 = vmatprep.subr.mxu0 0.0
    %254 = vmatpush1.xpose.msra.mxu0 0.0
    %255 = vmatprep.subr.mxu0 0.0
    %256 = vmatpush1.xpose.msra.mxu0 0.0
    %257 = vmatprep.subr.mxu0 0.0
    %258 = vmatpush1.xpose.msra.mxu0 0.0
    %259 = vmatprep.subr.mxu0 0.0
    %260 = vmatpush1.xpose.msra.mxu0 0.0
    %261 = vmatprep.subr.mxu0 0.0
    %262 = vmatpush1.xpose.msra.mxu0 0.0
    %263 = vmatprep.subr.mxu0 0.0
    %264 = vmatpush1.xpose.msra.mxu0 0.0
    %265 = vmatprep.subr.mxu0 0.0
    %266 = vmatpush1.xpose.msra.mxu0 0.0
    %267 = vmatprep.subr.mxu0 0.0
    %268 = vmatpush1.xpose.msra.mxu0 0.0
    %269 = vmatprep.subr.mxu0 0.0
    %270 = vmatpush1.xpose.msra.mxu0 0.0
    %271 = vmatprep.subr.mxu0 0.0
    %272 = vmatpush1.xpose.msra.mxu0 0.0
    %273 = vmatprep.subr.mxu0 0.0
    %274 = vmatpush1.xpose.msra.mxu0 0.0
    %275 = vmatprep.subr.mxu0 0.0
    %276 = vmatpush1.xpose.msra.mxu0 0.0
    %277 = vmatprep.subr.mxu0 0.0
    %278 = vmatpush1.xpose.msra.mxu0 0.0
    %279 = vmatprep.subr.mxu0 0.0
    %280 = vmatpush1.xpose.msra.mxu0 %v244
    %281 = vmatprep.subr.mxu0 0.0
    %282 = vmatpush2.xpose.msra.mxu0 0.0
    %283 = vmatprep.subr.mxu0 0.0
    %284 = vmatpush2.xpose.msra.mxu0 0.0
    %285 = vmatprep.subr.mxu0 0.0
    %286 = vmatpush2.xpose.msra.mxu0 0.0
    %287 = vmatprep.subr.mxu0 0.0
    %288 = vmatpush2.xpose.msra.mxu0 0.0
    %289 = vmatprep.subr.mxu0 0.0
    %290 = vmatpush2.xpose.msra.mxu0 0.0
    %291 = vmatprep.subr.mxu0 0.0
    %292 = vmatpush2.xpose.msra.mxu0 0.0
    %293 = vmatprep.subr.mxu0 0.0
    %294 = vmatpush2.xpose.msra.mxu0 0.0
    %295 = vmatprep.subr.mxu0 0.0
    %296 = vmatpush2.xpose.msra.mxu0 0.0
    %297 = vmatprep.subr.mxu0 0.0
    %298 = vmatpush2.xpose.msra.mxu0 0.0
    %299 = vmatprep.subr.mxu0 0.0
    %300 = vmatpush2.xpose.msra.mxu0 0.0
    %301 = vmatprep.subr.mxu0 0.0
    %302 = vmatpush2.xpose.msra.mxu0 0.0
    %303 = vmatprep.subr.mxu0 0.0
    %304 = vmatpush2.xpose.msra.mxu0 0.0
    %305 = vmatprep.subr.mxu0 0.0
    %306 = vmatpush2.xpose.msra.mxu0 0.0
    %307 = vmatprep.subr.mxu0 0.0
    %308 = vmatpush2.xpose.msra.mxu0 0.0
    %309 = vmatprep.subr.mxu0 0.0
    %310 = vmatpush2.xpose.msra.mxu0 0.0
    %311 = vmatprep.subr.mxu0 0.0
    %312 = vmatpush2.xpose.msra.mxu0 0.0
    %313 = vmatprep.mubr.f32.mxu0 0.0
    %314 = vmatmul.mubr.f32.gmra.mxu0 %v246
    %v315 = vpop.f32.mrf.mxu0
    %v316 = vadd.f32 %v248, %v315
    %v317 = vpop.f32.mrf.mxu0
    %318 = vdwg.mxu0
    %v319 = vxor.u32 %v316, 2147483648
    %v320 = vmul.f32 %v319, 1.442695
    %v321 = vpow.pop %v320
    %v322 = vadd.f32 %v321, 1.0
    %v323 = vrcp.pop %v322
    %v324 = vmul.f32 1.0, %v323
    %vm325 = vcmask 57344
    %326 = vst.msk [vmem:[#allocation12] sm:$0x1] %vm325, %v324
    // Predicated region
    $region46: #{fullmodel_forward.1} parent=1 // pred_check
      _
    $region47: #{fullmodel_forward.1} parent=1 // pred_check_branch
      %328 = sbr.rel (0) target = $region49
    $region48: #{fullmodel_forward.1} parent=1 // pred_region
      %s330 = ssub.s32 128, 128
      %331 = vsyncadd [#allocation5], %s330
      %s333 = sshll.u32 [#allocation11], 4
      %s334 = int_to_ptr.vmem [resolvable:$true] %s333
      %336 = dma.vmem_to_hbm [thread:$0]  %s334, 128, %s7, [#allocation5]
    $region49: #{fullmodel_forward.1} parent=1 // pred_fallthru
      _
    // Predicated region
    $region50: #{fullmodel_forward.1} parent=1 // pred_check
      _
    $region51: #{fullmodel_forward.1} parent=1 // pred_check_branch
      %338 = sbr.rel (0) target = $region53
    $region52: #{fullmodel_forward.1} parent=1 // pred_region
      %s340 = ssub.s32 16, 16
      %341 = vsyncadd [#allocation13], %s340
      %s343 = sshll.u32 [#allocation12], 4
      %s344 = int_to_ptr.vmem [resolvable:$true] %s343
      %346 = dma.vmem_to_hbm [thread:$0]  %s344, 16, %s8, [#allocation13]
    $region53: #{fullmodel_forward.1} parent=1 // pred_fallthru
      _
    // Predicated region
    $region54: #{fullmodel_forward.1} parent=1 // pred_check
      _
    $region55: #{fullmodel_forward.1} parent=1 // pred_check_branch
      %348 = sbr.rel (0) target = $region57
    $region56: #{fullmodel_forward.1} parent=1 // pred_region
      %349 = dma.done [#allocation5], 128
    $region57: #{fullmodel_forward.1} parent=1 // pred_fallthru
      _
    // Predicated region
    $region58: #{fullmodel_forward.1} parent=1 // pred_check
      _
    $region59: #{fullmodel_forward.1} parent=1 // pred_check_branch
      %351 = sbr.rel (0) target = $region61
    $region60: #{fullmodel_forward.1} parent=1 // pred_region
      %352 = dma.done [#allocation13], 16
    $region61: #{fullmodel_forward.1} parent=1 // pred_fallthru
      _
    %353 = vsyncpa [#allocation4], 1
    %354 = vsyncpa [#allocation7], 1
    %355 = vsyncpa [#allocation10], 1
    %356 = vsyncpa [#allocation5], 1
    %357 = vsyncpa [#allocation13], 1

</llo_original>
